<compile_context>
chip_gen: v7x
topology: tpu7x:2x2x1
jax: 0.10.0
libtpu: 0.0.40
codegen_flags: <defaults>
</compile_context>

<pallas_src>
import functools
import math

import jax
import jax.numpy as jnp
from jax import lax
from jax.experimental import pallas as pl
from jax.experimental.pallas import tpu as pltpu


def _round_up(x, m):
    return ((x + m - 1) // m) * m


def _alif_seq_kernel(*refs, time_tile, seq_len, use_rec, analog_input,
                     alpha, beta, ro, b_0, beta_adapt):
    if use_rec:
        (seq_ref, wrec_ref, syn0_ref, mem0_ref, s0_ref, b0_ref,
         spk_ref, syn_ref, mem_ref, s_ref, b_ref) = refs
    else:
        (seq_ref, syn0_ref, mem0_ref, s0_ref, b0_ref,
         spk_ref, syn_ref, mem_ref, s_ref, b_ref) = refs
        wrec_ref = None

    ti = pl.program_id(1)

    # Load carried state into the VMEM-resident output blocks once, at the
    # first time tile of this batch tile (outputs are accumulators across t).
    @pl.when(ti == 0)
    def _():
        syn_ref[...] = syn0_ref[...]
        mem_ref[...] = mem0_ref[...]
        s_ref[...] = s0_ref[...]
        b_ref[...] = b0_ref[...]

    syn = syn_ref[...]                 # (TB, Nout_p)
    mem = mem_ref[...]
    S = s_ref[...]                     # previous step's spikes
    b = b_ref[...]

    needs_mask = (seq_len % time_tile) != 0
    base = ti * time_tile

    # Fully unrolled inner time loop: static indices -> zero-cost ref views,
    # amortizes per-grid-step overhead over `time_tile` timesteps.
    for j in range(time_tile):
        xj = seq_ref[j]                # (TB, Nout_p): x[t] (analog) or h1[t]

        # threshold adaptation (uses previous S and b, like PyTorch forward)
        b_new = ro * b + (1.0 - ro) * S
        thr = b_0 + beta_adapt * b_new

        if analog_input:
            # new_syn = raw input (requires nb_inputs == nb_outputs); the h1
            # matmuls are dead code in this mode of the PyTorch forward.
            new_syn = xj
        else:
            h1 = xj                    # feedforward projection precomputed
            if use_rec:
                h1 = h1 + jnp.dot(S, wrec_ref[...],
                                  preferred_element_type=jnp.float32)
            new_syn = alpha * syn + h1

        new_mem = beta * mem + new_syn
        # SurrGradSpike.forward: heaviside, 1.0 where (new_mem - thr) >= 0
        out = jnp.where(new_mem - thr >= 0.0, 1.0, 0.0).astype(jnp.float32)
        new_mem_rst = new_mem * (1.0 - out)

        spk_ref[j] = out               # lane-dense (TB, Nout_p) store

        if needs_mask:
            valid = (base + j) < seq_len
            syn = jnp.where(valid, new_syn, syn)
            mem = jnp.where(valid, new_mem_rst, mem)
            S = jnp.where(valid, out, S)
            b = jnp.where(valid, b_new, b)
        else:
            syn, mem, S, b = new_syn, new_mem_rst, out, b_new

    syn_ref[...] = syn
    mem_ref[...] = mem
    s_ref[...] = S
    b_ref[...] = b


def _alif_forward(xs, w_pad, wrec_pad, syn, mem, S, b, *,
                  alpha, beta, ro, b_0, beta_adapt,
                  is_recurrent, analog_input, batch_tile, time_tile):
    """Pad to lane-dense shapes, hoist the input projection, run the fused
    sequence kernel, crop padding."""
    T, B, Nin = xs.shape
    Nout = syn.shape[1]
    Nin_p, Nout_p = w_pad.shape
    f32 = jnp.float32

    tt = max(1, min(time_tile, T))
    Tp = _round_up(T, tt)
    Bp = _round_up(B, batch_tile)
    n_btiles = Bp // batch_tile
    n_ttiles = Tp // tt

    xs_p = jnp.zeros((Tp, Bp, Nin_p), f32).at[:T, :B, :Nin].set(xs.astype(f32))

    if analog_input:
        seq_p = xs_p                   # Nin_p == Nout_p (enforced at init)
    else:
        # Hoist the time-invariant feedforward projection out of the
        # sequential kernel: one big MXU-efficient batched matmul instead of
        # T tiny serialized ones.
        seq_p = jnp.einsum("tbi,io->tbo", xs_p, w_pad,
                           precision=lax.Precision.HIGHEST)

    def pad_state(a):
        return jnp.zeros((Bp, Nout_p), f32).at[:B, :Nout].set(a.astype(f32))

    use_rec = (not analog_input) and is_recurrent

    kernel = functools.partial(
        _alif_seq_kernel, time_tile=tt, seq_len=T, use_rec=use_rec,
        analog_input=analog_input, alpha=alpha, beta=beta, ro=ro,
        b_0=b_0, beta_adapt=beta_adapt)

    seq_spec = pl.BlockSpec((tt, batch_tile, Nout_p), lambda bi, ti: (ti, bi, 0))
    wrec_spec = pl.BlockSpec((Nout_p, Nout_p), lambda bi, ti: (0, 0))
    st_spec = pl.BlockSpec((batch_tile, Nout_p), lambda bi, ti: (bi, 0))
    spk_spec = pl.BlockSpec((tt, batch_tile, Nout_p), lambda bi, ti: (ti, bi, 0))

    in_specs = [seq_spec]
    inputs = [seq_p]
    if use_rec:
        in_specs.append(wrec_spec)
        inputs.append(wrec_pad)
    in_specs += [st_spec, st_spec, st_spec, st_spec]
    inputs += [pad_state(syn), pad_state(mem), pad_state(S), pad_state(b)]

    st_sds = jax.ShapeDtypeStruct((Bp, Nout_p), f32)
    out_shape = (jax.ShapeDtypeStruct((Tp, Bp, Nout_p), f32),
                 st_sds, st_sds, st_sds, st_sds)

    base = 2 if use_rec else 1
    aliases = {base + i: 1 + i for i in range(4)}   # init state -> final state

    spikes, syn_f, mem_f, s_f, b_f = pl.pallas_call(
        kernel,
        grid=(n_btiles, n_ttiles),
        in_specs=in_specs,
        out_specs=(spk_spec, st_spec, st_spec, st_spec, st_spec),
        out_shape=out_shape,
        input_output_aliases=aliases,
        compiler_params=pltpu.CompilerParams(
            dimension_semantics=("parallel", "arbitrary")),
    )(*inputs)

    spikes = spikes[:T, :B, :Nout]
    crop = lambda a: a[:B, :Nout]
    return spikes, (crop(syn_f), crop(mem_f), crop(s_f), crop(b_f))


_alif_forward_jit = jax.jit(
    _alif_forward,
    static_argnames=("alpha", "beta", "ro", "b_0", "beta_adapt",
                     "is_recurrent", "analog_input", "batch_tile", "time_tile"))


class ALIFNeuronPallas:
    """JAX/Pallas port of ALIF_neuron.

    Processes a whole (T, B, nb_inputs) sequence in a single fused Pallas
    kernel; state (syn, mem, S, b) is carried explicitly (functional)."""

    def __init__(self, nb_inputs, nb_outputs, alpha, beta, is_recurrent=True,
                 fwd_weight_scale=1.0, rec_weight_scale=1.0, b_0=1.0, dt=1.0,
                 tau_adp=20.0, beta_adapt=1.8, analog_input=True,
                 key=None, batch_tile=8, time_tile=8):
        assert batch_tile % 8 == 0, "batch_tile must be a multiple of 8 sublanes"
        assert time_tile >= 1
        if analog_input and nb_inputs != nb_outputs:
            raise ValueError("analog_input=True requires nb_inputs == nb_outputs")
        self.nb_inputs = int(nb_inputs)
        self.nb_outputs = int(nb_outputs)
        self.alpha = float(alpha)
        self.beta = float(beta)
        self.is_recurrent = bool(is_recurrent)
        self.b_0 = float(b_0)
        self.dt = float(dt)
        self.beta_adapt = float(beta_adapt)
        self.ro = float(math.exp(-1.0 * self.dt / float(tau_adp)))
        self.analog_input = bool(analog_input)
        self.batch_tile = int(batch_tile)
        self.time_tile = int(time_tile)

        if key is None:
            key = jax.random.PRNGKey(0)
        k_fwd, k_rec = jax.random.split(key)
        self.weight = (jax.random.normal(k_fwd, (nb_inputs, nb_outputs), jnp.float32)
                       * (float(fwd_weight_scale) / math.sqrt(nb_inputs)))
        if is_recurrent:
            # PyTorch init also divides by sqrt(nb_inputs) for the recurrent weight.
            self.weight_rec = (jax.random.normal(k_rec, (nb_outputs, nb_outputs),
                                                 jnp.float32)
                               * (float(rec_weight_scale) / math.sqrt(nb_inputs)))
        else:
            self.weight_rec = jnp.zeros((nb_outputs, nb_outputs), jnp.float32)
        self._build_padded()

    def _build_padded(self):
        # lane-dense padded weights: last dims multiples of 128
        self._nin_p = _round_up(self.nb_inputs, 128)
        self._nout_p = _round_up(self.nb_outputs, 128)
        self._w_pad = (jnp.zeros((self._nin_p, self._nout_p), jnp.float32)
                       .at[:self.nb_inputs, :self.nb_outputs].set(self.weight))
        self._wrec_pad = (jnp.zeros((self._nout_p, self._nout_p), jnp.float32)
                          .at[:self.nb_outputs, :self.nb_outputs].set(self.weight_rec))

    def set_weights(self, weight, weight_rec=None):
        self.weight = jnp.asarray(weight, jnp.float32)
        if weight_rec is not None:
            self.weight_rec = jnp.asarray(weight_rec, jnp.float32)
        self._build_padded()

    def init_state(self, batch):
        z = jnp.zeros((batch, self.nb_outputs), jnp.float32)
        return (z, z, z, z)   # (syn, mem, S, b)

    def __call__(self, xs, state=None):
        T, B, Nin = xs.shape
        assert Nin == self.nb_inputs
        if state is None:
            state = self.init_state(B)
        syn, mem, S, b = state
        spikes, new_state = _alif_forward_jit(
            xs, self._w_pad, self._wrec_pad, syn, mem, S, b,
            alpha=self.alpha, beta=self.beta, ro=self.ro, b_0=self.b_0,
            beta_adapt=self.beta_adapt, is_recurrent=self.is_recurrent,
            analog_input=self.analog_input, batch_tile=self.batch_tile,
            time_tile=self.time_tile)
        return spikes, new_state


def _reference_forward(neuron, xs, state=None):
    """Pure-JAX reference mirroring the PyTorch ALIF_neuron.forward."""
    T, B, _ = xs.shape
    if state is None:
        state = neuron.init_state(B)
    weight, weight_rec = neuron.weight, neuron.weight_rec

    def step(carry, x):
        syn, mem, S, b = carry
        h1 = jnp.dot(x, weight, precision=lax.Precision.HIGHEST)
        if neuron.is_recurrent:
            h1 = h1 + jnp.dot(S, weight_rec, precision=lax.Precision.HIGHEST)
        b = neuron.ro * b + (1.0 - neuron.ro) * S
        thr = neuron.b_0 + neuron.beta_adapt * b
        new_syn = x if neuron.analog_input else neuron.alpha * syn + h1
        new_mem = neuron.beta * mem + new_syn
        mthr = new_mem - thr
        out = jnp.where(mthr >= 0.0, 1.0, 0.0)
        return (new_syn, new_mem * (1.0 - out), out, b), out

    carry, outs = lax.scan(step, state, xs)
    return outs, carry


if __name__ == "__main__":
    key = jax.random.PRNGKey(0)
    k_a, k_b, k_xa, k_xb = jax.random.split(key, 4)

    # ---- Config A: module defaults (is_recurrent=True, analog_input=True). ----
    T, B, N = 8, 2, 128
    neuron_a = ALIFNeuronPallas(N, N, alpha=0.9, beta=0.95, is_recurrent=True,
                                fwd_weight_scale=1.0, rec_weight_scale=1.0,
                                b_0=1.0, dt=1.0, tau_adp=20.0, beta_adapt=1.8,
                                analog_input=True, key=k_a)
    xs_a = jax.random.normal(k_xa, (T, B, N), jnp.float32) * 1.5
    spk_a, st_a = neuron_a(xs_a)
    spk_a_ref, st_a_ref = _reference_forward(neuron_a, xs_a)
    assert spk_a.shape == (T, B, N)
    assert bool(jnp.array_equal(spk_a, spk_a_ref)), "config A: spike mismatch"
    for got, ref in zip(st_a, st_a_ref):
        assert bool(jnp.allclose(got, ref, atol=1e-5)), "config A: state mismatch"

    # State carry across calls: two half-sequences must reproduce one full run.
    spk_a1, st_mid = neuron_a(xs_a[: T // 2])
    spk_a2, _ = neuron_a(xs_a[T // 2:], state=st_mid)
    assert bool(jnp.array_equal(jnp.concatenate([spk_a1, spk_a2], axis=0), spk_a)), \
        "config A: chained-state spike mismatch"

    # ---- Config B: projected + recurrent synaptic input (analog_input=False),
    #      non-aligned sizes + T not a multiple of time_tile to exercise the
    #      (8,128) padding path and the time-tail mask. ----
    T2, B2, Nin2, Nout2 = 8, 2, 48, 100
    neuron_b = ALIFNeuronPallas(Nin2, Nout2, alpha=0.8, beta=0.9,
                                is_recurrent=True, fwd_weight_scale=3.0,
                                rec_weight_scale=1.0, b_0=1.0, dt=1.0,
                                tau_adp=20.0, beta_adapt=1.8,
                                analog_input=False, key=k_b, time_tile=8)
    # Quantize weights/inputs to bf16-exact grids so every matmul result is
    # exactly representable (and identical) regardless of MXU precision mode
    # (keeps the heaviside threshold comparison deterministic).
    neuron_b.set_weights(jnp.round(neuron_b.weight * 16.0) / 16.0,
                         jnp.round(neuron_b.weight_rec * 16.0) / 16.0)
    xs_b = jnp.round(jax.random.normal(k_xb, (T2, B2, Nin2), jnp.float32) * 16.0) / 8.0
    spk_b, st_b = neuron_b(xs_b)
    spk_b_ref, st_b_ref = _reference_forward(neuron_b, xs_b)
    assert spk_b.shape == (T2, B2, Nout2)
    assert bool(jnp.array_equal(spk_b, spk_b_ref)), "config B: spike mismatch"
    for got, ref in zip(st_b, st_b_ref):
        assert bool(jnp.allclose(got, ref, atol=1e-3, rtol=1e-4)), \
            "config B: state mismatch"

    # Config B with a T that does not divide the time tile (tail-mask path).
    T3 = 5
    spk_c, st_c = neuron_b(xs_b[:T3])
    spk_c_ref, st_c_ref = _reference_forward(neuron_b, xs_b[:T3])
    assert bool(jnp.array_equal(spk_c, spk_c_ref)), "config C: spike mismatch"
    for got, ref in zip(st_c, st_c_ref):
        assert bool(jnp.allclose(got, ref, atol=1e-3, rtol=1e-4)), \
            "config C: state mismatch"

    jax.block_until_ready((spk_a, st_a, spk_b, st_b, spk_c, st_c))
    print("KERNEL_OK")
</pallas_src>

<mosaic_0001>
module attributes {stable_mosaic.version = 11 : i64} {
  func.func @_alif_seq_kernel(%arg0: i32, %arg1: i32, %arg2: memref<8x8x128xf32, #tpu.memory_space<vmem>>, %arg3: memref<8x128xf32, #tpu.memory_space<vmem>>, %arg4: memref<8x128xf32, #tpu.memory_space<vmem>>, %arg5: memref<8x128xf32, #tpu.memory_space<vmem>>, %arg6: memref<8x128xf32, #tpu.memory_space<vmem>>, %arg7: memref<8x8x128xf32, #tpu.memory_space<vmem>>, %arg8: memref<8x128xf32, #tpu.memory_space<vmem>>, %arg9: memref<8x128xf32, #tpu.memory_space<vmem>>, %arg10: memref<8x128xf32, #tpu.memory_space<vmem>>, %arg11: memref<8x128xf32, #tpu.memory_space<vmem>>) attributes {dimension_semantics = [#tpu.dimension_semantics<parallel>, #tpu.dimension_semantics<arbitrary>], iteration_bounds = array<i64: 1, 1>, scalar_prefetch = 0 : i64, scratch_operands = 0 : i64, tpu.core_type = #tpu.core_type<tc>, window_params = [{transform_indices = @transform_0, window_bounds = array<i64: 8, 8, 128>}, {transform_indices = @transform_1, window_bounds = array<i64: 8, 128>}, {transform_indices = @transform_2, window_bounds = array<i64: 8, 128>}, {transform_indices = @transform_3, window_bounds = array<i64: 8, 128>}, {transform_indices = @transform_4, window_bounds = array<i64: 8, 128>}, {transform_indices = @transform_5, window_bounds = array<i64: 8, 8, 128>}, {transform_indices = @transform_6, window_bounds = array<i64: 8, 128>}, {transform_indices = @transform_7, window_bounds = array<i64: 8, 128>}, {transform_indices = @transform_8, window_bounds = array<i64: 8, 128>}, {transform_indices = @transform_9, window_bounds = array<i64: 8, 128>}]} {
    %c0_i32 = arith.constant 0 : i32
    %0 = arith.cmpi eq, %arg1, %c0_i32 : i32
    %1 = arith.extui %0 : i1 to i32
    %c0_i32_0 = arith.constant 0 : i32
    %2 = arith.cmpi ne, %1, %c0_i32_0 : i32
    scf.if %2 {
      %c0_126 = arith.constant 0 : index
      %c0_127 = arith.constant 0 : index
      %218 = vector.load %arg3[%c0_126, %c0_127] : memref<8x128xf32, #tpu.memory_space<vmem>>, vector<8x128xf32>
      %c0_128 = arith.constant 0 : index
      %c0_129 = arith.constant 0 : index
      %219 = vector.load %arg8[%c0_128, %c0_129] : memref<8x128xf32, #tpu.memory_space<vmem>>, vector<8x128xf32>
      tpu.vector_store %arg8[%c0_128, %c0_129], %218 {strides = array<i32>} : memref<8x128xf32, #tpu.memory_space<vmem>>, vector<8x128xf32>,
      %c0_130 = arith.constant 0 : index
      %c0_131 = arith.constant 0 : index
      %220 = vector.load %arg4[%c0_130, %c0_131] : memref<8x128xf32, #tpu.memory_space<vmem>>, vector<8x128xf32>
      %c0_132 = arith.constant 0 : index
      %c0_133 = arith.constant 0 : index
      %221 = vector.load %arg9[%c0_132, %c0_133] : memref<8x128xf32, #tpu.memory_space<vmem>>, vector<8x128xf32>
      tpu.vector_store %arg9[%c0_132, %c0_133], %220 {strides = array<i32>} : memref<8x128xf32, #tpu.memory_space<vmem>>, vector<8x128xf32>,
      %c0_134 = arith.constant 0 : index
      %c0_135 = arith.constant 0 : index
      %222 = vector.load %arg5[%c0_134, %c0_135] : memref<8x128xf32, #tpu.memory_space<vmem>>, vector<8x128xf32>
      %c0_136 = arith.constant 0 : index
      %c0_137 = arith.constant 0 : index
      %223 = vector.load %arg10[%c0_136, %c0_137] : memref<8x128xf32, #tpu.memory_space<vmem>>, vector<8x128xf32>
      tpu.vector_store %arg10[%c0_136, %c0_137], %222 {strides = array<i32>} : memref<8x128xf32, #tpu.memory_space<vmem>>, vector<8x128xf32>,
      %c0_138 = arith.constant 0 : index
      %c0_139 = arith.constant 0 : index
      %224 = vector.load %arg6[%c0_138, %c0_139] : memref<8x128xf32, #tpu.memory_space<vmem>>, vector<8x128xf32>
      %c0_140 = arith.constant 0 : index
      %c0_141 = arith.constant 0 : index
      %225 = vector.load %arg11[%c0_140, %c0_141] : memref<8x128xf32, #tpu.memory_space<vmem>>, vector<8x128xf32>
      tpu.vector_store %arg11[%c0_140, %c0_141], %224 {strides = array<i32>} : memref<8x128xf32, #tpu.memory_space<vmem>>, vector<8x128xf32>,
    } else {
    }
    %c0 = arith.constant 0 : index
    %c0_1 = arith.constant 0 : index
    %3 = vector.load %arg9[%c0, %c0_1] : memref<8x128xf32, #tpu.memory_space<vmem>>, vector<8x128xf32>
    %c0_2 = arith.constant 0 : index
    %c0_3 = arith.constant 0 : index
    %4 = vector.load %arg10[%c0_2, %c0_3] : memref<8x128xf32, #tpu.memory_space<vmem>>, vector<8x128xf32>
    %c0_4 = arith.constant 0 : index
    %c0_5 = arith.constant 0 : index
    %5 = vector.load %arg11[%c0_4, %c0_5] : memref<8x128xf32, #tpu.memory_space<vmem>>, vector<8x128xf32>
    %c0_6 = arith.constant 0 : index
    %c0_7 = arith.constant 0 : index
    %c0_8 = arith.constant 0 : index
    %6 = vector.load %arg2[%c0_6, %c0_7, %c0_8] : memref<8x8x128xf32, #tpu.memory_space<vmem>>, vector<1x8x128xf32>
    %7 = vector.shape_cast %6 : vector<1x8x128xf32> to vector<8x128xf32>
    %cst = arith.constant 0.951229453 : f32
    %8 = vector.broadcast %cst : f32 to vector<8x128xf32>
    %9 = arith.mulf %8, %5 : vector<8x128xf32>
    %cst_9 = arith.constant 0.0487705767 : f32
    %10 = vector.broadcast %cst_9 : f32 to vector<8x128xf32>
    %11 = arith.mulf %10, %4 : vector<8x128xf32>
    %12 = arith.addf %9, %11 : vector<8x128xf32>
    %cst_10 = arith.constant 1.800000e+00 : f32
    %13 = vector.broadcast %cst_10 : f32 to vector<8x128xf32>
    %14 = arith.mulf %13, %12 : vector<8x128xf32>
    %cst_11 = arith.constant 1.000000e+00 : f32
    %15 = vector.broadcast %cst_11 : f32 to vector<8x128xf32>
    %16 = arith.addf %15, %14 : vector<8x128xf32>
    %cst_12 = arith.constant 0.949999988 : f32
    %17 = vector.broadcast %cst_12 : f32 to vector<8x128xf32>
    %18 = arith.mulf %17, %3 : vector<8x128xf32>
    %19 = arith.addf %18, %7 : vector<8x128xf32>
    %20 = arith.subf %19, %16 : vector<8x128xf32>
    %cst_13 = arith.constant 0.000000e+00 : f32
    %21 = vector.broadcast %cst_13 : f32 to vector<8x128xf32>
    %22 = arith.cmpf oge, %20, %21 : vector<8x128xf32>
    %cst_14 = arith.constant 1.000000e+00 : f32
    %cst_15 = arith.constant 0.000000e+00 : f32
    %23 = vector.broadcast %cst_14 : f32 to vector<8x128xf32>
    %24 = vector.broadcast %cst_15 : f32 to vector<8x128xf32>
    %25 = arith.select %22, %23, %24 : vector<8x128xi1>, vector<8x128xf32>
    %cst_16 = arith.constant 1.000000e+00 : f32
    %26 = vector.broadcast %cst_16 : f32 to vector<8x128xf32>
    %27 = arith.subf %26, %25 : vector<8x128xf32>
    %28 = arith.mulf %19, %27 : vector<8x128xf32>
    %c0_17 = arith.constant 0 : index
    %c0_18 = arith.constant 0 : index
    %c0_19 = arith.constant 0 : index
    %29 = vector.load %arg7[%c0_17, %c0_18, %c0_19] : memref<8x8x128xf32, #tpu.memory_space<vmem>>, vector<1x8x128xf32>
    %30 = vector.shape_cast %29 : vector<1x8x128xf32> to vector<8x128xf32>
    %31 = vector.shape_cast %25 : vector<8x128xf32> to vector<1x8x128xf32>
    tpu.vector_store %arg7[%c0_17, %c0_18, %c0_19], %31 {strides = array<i32>} : memref<8x8x128xf32, #tpu.memory_space<vmem>>, vector<1x8x128xf32>,
    %c1 = arith.constant 1 : index
    %c0_20 = arith.constant 0 : index
    %c0_21 = arith.constant 0 : index
    %32 = vector.load %arg2[%c1, %c0_20, %c0_21] : memref<8x8x128xf32, #tpu.memory_space<vmem>>, vector<1x8x128xf32>
    %33 = vector.shape_cast %32 : vector<1x8x128xf32> to vector<8x128xf32>
    %cst_22 = arith.constant 0.951229453 : f32
    %34 = vector.broadcast %cst_22 : f32 to vector<8x128xf32>
    %35 = arith.mulf %34, %12 : vector<8x128xf32>
    %cst_23 = arith.constant 0.0487705767 : f32
    %36 = vector.broadcast %cst_23 : f32 to vector<8x128xf32>
    %37 = arith.mulf %36, %25 : vector<8x128xf32>
    %38 = arith.addf %35, %37 : vector<8x128xf32>
    %cst_24 = arith.constant 1.800000e+00 : f32
    %39 = vector.broadcast %cst_24 : f32 to vector<8x128xf32>
    %40 = arith.mulf %39, %38 : vector<8x128xf32>
    %cst_25 = arith.constant 1.000000e+00 : f32
    %41 = vector.broadcast %cst_25 : f32 to vector<8x128xf32>
    %42 = arith.addf %41, %40 : vector<8x128xf32>
    %cst_26 = arith.constant 0.949999988 : f32
    %43 = vector.broadcast %cst_26 : f32 to vector<8x128xf32>
    %44 = arith.mulf %43, %28 : vector<8x128xf32>
    %45 = arith.addf %44, %33 : vector<8x128xf32>
    %46 = arith.subf %45, %42 : vector<8x128xf32>
    %cst_27 = arith.constant 0.000000e+00 : f32
    %47 = vector.broadcast %cst_27 : f32 to vector<8x128xf32>
    %48 = arith.cmpf oge, %46, %47 : vector<8x128xf32>
    %cst_28 = arith.constant 1.000000e+00 : f32
    %cst_29 = arith.constant 0.000000e+00 : f32
    %49 = vector.broadcast %cst_28 : f32 to vector<8x128xf32>
    %50 = vector.broadcast %cst_29 : f32 to vector<8x128xf32>
    %51 = arith.select %48, %49, %50 : vector<8x128xi1>, vector<8x128xf32>
    %cst_30 = arith.constant 1.000000e+00 : f32
    %52 = vector.broadcast %cst_30 : f32 to vector<8x128xf32>
    %53 = arith.subf %52, %51 : vector<8x128xf32>
    %54 = arith.mulf %45, %53 : vector<8x128xf32>
    %c1_31 = arith.constant 1 : index
    %c0_32 = arith.constant 0 : index
    %c0_33 = arith.constant 0 : index
    %55 = vector.load %arg7[%c1_31, %c0_32, %c0_33] : memref<8x8x128xf32, #tpu.memory_space<vmem>>, vector<1x8x128xf32>
    %56 = vector.shape_cast %55 : vector<1x8x128xf32> to vector<8x128xf32>
    %57 = vector.shape_cast %51 : vector<8x128xf32> to vector<1x8x128xf32>
    tpu.vector_store %arg7[%c1_31, %c0_32, %c0_33], %57 {strides = array<i32>} : memref<8x8x128xf32, #tpu.memory_space<vmem>>, vector<1x8x128xf32>,
    %c2 = arith.constant 2 : index
    %c0_34 = arith.constant 0 : index
    %c0_35 = arith.constant 0 : index
    %58 = vector.load %arg2[%c2, %c0_34, %c0_35] : memref<8x8x128xf32, #tpu.memory_space<vmem>>, vector<1x8x128xf32>
    %59 = vector.shape_cast %58 : vector<1x8x128xf32> to vector<8x128xf32>
    %cst_36 = arith.constant 0.951229453 : f32
    %60 = vector.broadcast %cst_36 : f32 to vector<8x128xf32>
    %61 = arith.mulf %60, %38 : vector<8x128xf32>
    %cst_37 = arith.constant 0.0487705767 : f32
    %62 = vector.broadcast %cst_37 : f32 to vector<8x128xf32>
    %63 = arith.mulf %62, %51 : vector<8x128xf32>
    %64 = arith.addf %61, %63 : vector<8x128xf32>
    %cst_38 = arith.constant 1.800000e+00 : f32
    %65 = vector.broadcast %cst_38 : f32 to vector<8x128xf32>
    %66 = arith.mulf %65, %64 : vector<8x128xf32>
    %cst_39 = arith.constant 1.000000e+00 : f32
    %67 = vector.broadcast %cst_39 : f32 to vector<8x128xf32>
    %68 = arith.addf %67, %66 : vector<8x128xf32>
    %cst_40 = arith.constant 0.949999988 : f32
    %69 = vector.broadcast %cst_40 : f32 to vector<8x128xf32>
    %70 = arith.mulf %69, %54 : vector<8x128xf32>
    %71 = arith.addf %70, %59 : vector<8x128xf32>
    %72 = arith.subf %71, %68 : vector<8x128xf32>
    %cst_41 = arith.constant 0.000000e+00 : f32
    %73 = vector.broadcast %cst_41 : f32 to vector<8x128xf32>
    %74 = arith.cmpf oge, %72, %73 : vector<8x128xf32>
    %cst_42 = arith.constant 1.000000e+00 : f32
    %cst_43 = arith.constant 0.000000e+00 : f32
    %75 = vector.broadcast %cst_42 : f32 to vector<8x128xf32>
    %76 = vector.broadcast %cst_43 : f32 to vector<8x128xf32>
    %77 = arith.select %74, %75, %76 : vector<8x128xi1>, vector<8x128xf32>
    %cst_44 = arith.constant 1.000000e+00 : f32
    %78 = vector.broadcast %cst_44 : f32 to vector<8x128xf32>
    %79 = arith.subf %78, %77 : vector<8x128xf32>
    %80 = arith.mulf %71, %79 : vector<8x128xf32>
    %c2_45 = arith.constant 2 : index
    %c0_46 = arith.constant 0 : index
    %c0_47 = arith.constant 0 : index
    %81 = vector.load %arg7[%c2_45, %c0_46, %c0_47] : memref<8x8x128xf32, #tpu.memory_space<vmem>>, vector<1x8x128xf32>
    %82 = vector.shape_cast %81 : vector<1x8x128xf32> to vector<8x128xf32>
    %83 = vector.shape_cast %77 : vector<8x128xf32> to vector<1x8x128xf32>
    tpu.vector_store %arg7[%c2_45, %c0_46, %c0_47], %83 {strides = array<i32>} : memref<8x8x128xf32, #tpu.memory_space<vmem>>, vector<1x8x128xf32>,
    %c3 = arith.constant 3 : index
    %c0_48 = arith.constant 0 : index
    %c0_49 = arith.constant 0 : index
    %84 = vector.load %arg2[%c3, %c0_48, %c0_49] : memref<8x8x128xf32, #tpu.memory_space<vmem>>, vector<1x8x128xf32>
    %85 = vector.shape_cast %84 : vector<1x8x128xf32> to vector<8x128xf32>
    %cst_50 = arith.constant 0.951229453 : f32
    %86 = vector.broadcast %cst_50 : f32 to vector<8x128xf32>
    %87 = arith.mulf %86, %64 : vector<8x128xf32>
    %cst_51 = arith.constant 0.0487705767 : f32
    %88 = vector.broadcast %cst_51 : f32 to vector<8x128xf32>
    %89 = arith.mulf %88, %77 : vector<8x128xf32>
    %90 = arith.addf %87, %89 : vector<8x128xf32>
    %cst_52 = arith.constant 1.800000e+00 : f32
    %91 = vector.broadcast %cst_52 : f32 to vector<8x128xf32>
    %92 = arith.mulf %91, %90 : vector<8x128xf32>
    %cst_53 = arith.constant 1.000000e+00 : f32
    %93 = vector.broadcast %cst_53 : f32 to vector<8x128xf32>
    %94 = arith.addf %93, %92 : vector<8x128xf32>
    %cst_54 = arith.constant 0.949999988 : f32
    %95 = vector.broadcast %cst_54 : f32 to vector<8x128xf32>
    %96 = arith.mulf %95, %80 : vector<8x128xf32>
    %97 = arith.addf %96, %85 : vector<8x128xf32>
    %98 = arith.subf %97, %94 : vector<8x128xf32>
    %cst_55 = arith.constant 0.000000e+00 : f32
    %99 = vector.broadcast %cst_55 : f32 to vector<8x128xf32>
    %100 = arith.cmpf oge, %98, %99 : vector<8x128xf32>
    %cst_56 = arith.constant 1.000000e+00 : f32
    %cst_57 = arith.constant 0.000000e+00 : f32
    %101 = vector.broadcast %cst_56 : f32 to vector<8x128xf32>
    %102 = vector.broadcast %cst_57 : f32 to vector<8x128xf32>
    %103 = arith.select %100, %101, %102 : vector<8x128xi1>, vector<8x128xf32>
    %cst_58 = arith.constant 1.000000e+00 : f32
    %104 = vector.broadcast %cst_58 : f32 to vector<8x128xf32>
    %105 = arith.subf %104, %103 : vector<8x128xf32>
    %106 = arith.mulf %97, %105 : vector<8x128xf32>
    %c3_59 = arith.constant 3 : index
    %c0_60 = arith.constant 0 : index
    %c0_61 = arith.constant 0 : index
    %107 = vector.load %arg7[%c3_59, %c0_60, %c0_61] : memref<8x8x128xf32, #tpu.memory_space<vmem>>, vector<1x8x128xf32>
    %108 = vector.shape_cast %107 : vector<1x8x128xf32> to vector<8x128xf32>
    %109 = vector.shape_cast %103 : vector<8x128xf32> to vector<1x8x128xf32>
    tpu.vector_store %arg7[%c3_59, %c0_60, %c0_61], %109 {strides = array<i32>} : memref<8x8x128xf32, #tpu.memory_space<vmem>>, vector<1x8x128xf32>,
    %c4 = arith.constant 4 : index
    %c0_62 = arith.constant 0 : index
    %c0_63 = arith.constant 0 : index
    %110 = vector.load %arg2[%c4, %c0_62, %c0_63] : memref<8x8x128xf32, #tpu.memory_space<vmem>>, vector<1x8x128xf32>
    %111 = vector.shape_cast %110 : vector<1x8x128xf32> to vector<8x128xf32>
    %cst_64 = arith.constant 0.951229453 : f32
    %112 = vector.broadcast %cst_64 : f32 to vector<8x128xf32>
    %113 = arith.mulf %112, %90 : vector<8x128xf32>
    %cst_65 = arith.constant 0.0487705767 : f32
    %114 = vector.broadcast %cst_65 : f32 to vector<8x128xf32>
    %115 = arith.mulf %114, %103 : vector<8x128xf32>
    %116 = arith.addf %113, %115 : vector<8x128xf32>
    %cst_66 = arith.constant 1.800000e+00 : f32
    %117 = vector.broadcast %cst_66 : f32 to vector<8x128xf32>
    %118 = arith.mulf %117, %116 : vector<8x128xf32>
    %cst_67 = arith.constant 1.000000e+00 : f32
    %119 = vector.broadcast %cst_67 : f32 to vector<8x128xf32>
    %120 = arith.addf %119, %118 : vector<8x128xf32>
    %cst_68 = arith.constant 0.949999988 : f32
    %121 = vector.broadcast %cst_68 : f32 to vector<8x128xf32>
    %122 = arith.mulf %121, %106 : vector<8x128xf32>
    %123 = arith.addf %122, %111 : vector<8x128xf32>
    %124 = arith.subf %123, %120 : vector<8x128xf32>
    %cst_69 = arith.constant 0.000000e+00 : f32
    %125 = vector.broadcast %cst_69 : f32 to vector<8x128xf32>
    %126 = arith.cmpf oge, %124, %125 : vector<8x128xf32>
    %cst_70 = arith.constant 1.000000e+00 : f32
    %cst_71 = arith.constant 0.000000e+00 : f32
    %127 = vector.broadcast %cst_70 : f32 to vector<8x128xf32>
    %128 = vector.broadcast %cst_71 : f32 to vector<8x128xf32>
    %129 = arith.select %126, %127, %128 : vector<8x128xi1>, vector<8x128xf32>
    %cst_72 = arith.constant 1.000000e+00 : f32
    %130 = vector.broadcast %cst_72 : f32 to vector<8x128xf32>
    %131 = arith.subf %130, %129 : vector<8x128xf32>
    %132 = arith.mulf %123, %131 : vector<8x128xf32>
    %c4_73 = arith.constant 4 : index
    %c0_74 = arith.constant 0 : index
    %c0_75 = arith.constant 0 : index
    %133 = vector.load %arg7[%c4_73, %c0_74, %c0_75] : memref<8x8x128xf32, #tpu.memory_space<vmem>>, vector<1x8x128xf32>
    %134 = vector.shape_cast %133 : vector<1x8x128xf32> to vector<8x128xf32>
    %135 = vector.shape_cast %129 : vector<8x128xf32> to vector<1x8x128xf32>
    tpu.vector_store %arg7[%c4_73, %c0_74, %c0_75], %135 {strides = array<i32>} : memref<8x8x128xf32, #tpu.memory_space<vmem>>, vector<1x8x128xf32>,
    %c5 = arith.constant 5 : index
    %c0_76 = arith.constant 0 : index
    %c0_77 = arith.constant 0 : index
    %136 = vector.load %arg2[%c5, %c0_76, %c0_77] : memref<8x8x128xf32, #tpu.memory_space<vmem>>, vector<1x8x128xf32>
    %137 = vector.shape_cast %136 : vector<1x8x128xf32> to vector<8x128xf32>
    %cst_78 = arith.constant 0.951229453 : f32
    %138 = vector.broadcast %cst_78 : f32 to vector<8x128xf32>
    %139 = arith.mulf %138, %116 : vector<8x128xf32>
    %cst_79 = arith.constant 0.0487705767 : f32
    %140 = vector.broadcast %cst_79 : f32 to vector<8x128xf32>
    %141 = arith.mulf %140, %129 : vector<8x128xf32>
    %142 = arith.addf %139, %141 : vector<8x128xf32>
    %cst_80 = arith.constant 1.800000e+00 : f32
    %143 = vector.broadcast %cst_80 : f32 to vector<8x128xf32>
    %144 = arith.mulf %143, %142 : vector<8x128xf32>
    %cst_81 = arith.constant 1.000000e+00 : f32
    %145 = vector.broadcast %cst_81 : f32 to vector<8x128xf32>
    %146 = arith.addf %145, %144 : vector<8x128xf32>
    %cst_82 = arith.constant 0.949999988 : f32
    %147 = vector.broadcast %cst_82 : f32 to vector<8x128xf32>
    %148 = arith.mulf %147, %132 : vector<8x128xf32>
    %149 = arith.addf %148, %137 : vector<8x128xf32>
    %150 = arith.subf %149, %146 : vector<8x128xf32>
    %cst_83 = arith.constant 0.000000e+00 : f32
    %151 = vector.broadcast %cst_83 : f32 to vector<8x128xf32>
    %152 = arith.cmpf oge, %150, %151 : vector<8x128xf32>
    %cst_84 = arith.constant 1.000000e+00 : f32
    %cst_85 = arith.constant 0.000000e+00 : f32
    %153 = vector.broadcast %cst_84 : f32 to vector<8x128xf32>
    %154 = vector.broadcast %cst_85 : f32 to vector<8x128xf32>
    %155 = arith.select %152, %153, %154 : vector<8x128xi1>, vector<8x128xf32>
    %cst_86 = arith.constant 1.000000e+00 : f32
    %156 = vector.broadcast %cst_86 : f32 to vector<8x128xf32>
    %157 = arith.subf %156, %155 : vector<8x128xf32>
    %158 = arith.mulf %149, %157 : vector<8x128xf32>
    %c5_87 = arith.constant 5 : index
    %c0_88 = arith.constant 0 : index
    %c0_89 = arith.constant 0 : index
    %159 = vector.load %arg7[%c5_87, %c0_88, %c0_89] : memref<8x8x128xf32, #tpu.memory_space<vmem>>, vector<1x8x128xf32>
    %160 = vector.shape_cast %159 : vector<1x8x128xf32> to vector<8x128xf32>
    %161 = vector.shape_cast %155 : vector<8x128xf32> to vector<1x8x128xf32>
    tpu.vector_store %arg7[%c5_87, %c0_88, %c0_89], %161 {strides = array<i32>} : memref<8x8x128xf32, #tpu.memory_space<vmem>>, vector<1x8x128xf32>,
    %c6 = arith.constant 6 : index
    %c0_90 = arith.constant 0 : index
    %c0_91 = arith.constant 0 : index
    %162 = vector.load %arg2[%c6, %c0_90, %c0_91] : memref<8x8x128xf32, #tpu.memory_space<vmem>>, vector<1x8x128xf32>
    %163 = vector.shape_cast %162 : vector<1x8x128xf32> to vector<8x128xf32>
    %cst_92 = arith.constant 0.951229453 : f32
    %164 = vector.broadcast %cst_92 : f32 to vector<8x128xf32>
    %165 = arith.mulf %164, %142 : vector<8x128xf32>
    %cst_93 = arith.constant 0.0487705767 : f32
    %166 = vector.broadcast %cst_93 : f32 to vector<8x128xf32>
    %167 = arith.mulf %166, %155 : vector<8x128xf32>
    %168 = arith.addf %165, %167 : vector<8x128xf32>
    %cst_94 = arith.constant 1.800000e+00 : f32
    %169 = vector.broadcast %cst_94 : f32 to vector<8x128xf32>
    %170 = arith.mulf %169, %168 : vector<8x128xf32>
    %cst_95 = arith.constant 1.000000e+00 : f32
    %171 = vector.broadcast %cst_95 : f32 to vector<8x128xf32>
    %172 = arith.addf %171, %170 : vector<8x128xf32>
    %cst_96 = arith.constant 0.949999988 : f32
    %173 = vector.broadcast %cst_96 : f32 to vector<8x128xf32>
    %174 = arith.mulf %173, %158 : vector<8x128xf32>
    %175 = arith.addf %174, %163 : vector<8x128xf32>
    %176 = arith.subf %175, %172 : vector<8x128xf32>
    %cst_97 = arith.constant 0.000000e+00 : f32
    %177 = vector.broadcast %cst_97 : f32 to vector<8x128xf32>
    %178 = arith.cmpf oge, %176, %177 : vector<8x128xf32>
    %cst_98 = arith.constant 1.000000e+00 : f32
    %cst_99 = arith.constant 0.000000e+00 : f32
    %179 = vector.broadcast %cst_98 : f32 to vector<8x128xf32>
    %180 = vector.broadcast %cst_99 : f32 to vector<8x128xf32>
    %181 = arith.select %178, %179, %180 : vector<8x128xi1>, vector<8x128xf32>
    %cst_100 = arith.constant 1.000000e+00 : f32
    %182 = vector.broadcast %cst_100 : f32 to vector<8x128xf32>
    %183 = arith.subf %182, %181 : vector<8x128xf32>
    %184 = arith.mulf %175, %183 : vector<8x128xf32>
    %c6_101 = arith.constant 6 : index
    %c0_102 = arith.constant 0 : index
    %c0_103 = arith.constant 0 : index
    %185 = vector.load %arg7[%c6_101, %c0_102, %c0_103] : memref<8x8x128xf32, #tpu.memory_space<vmem>>, vector<1x8x128xf32>
    %186 = vector.shape_cast %185 : vector<1x8x128xf32> to vector<8x128xf32>
    %187 = vector.shape_cast %181 : vector<8x128xf32> to vector<1x8x128xf32>
    tpu.vector_store %arg7[%c6_101, %c0_102, %c0_103], %187 {strides = array<i32>} : memref<8x8x128xf32, #tpu.memory_space<vmem>>, vector<1x8x128xf32>,
    %c7 = arith.constant 7 : index
    %c0_104 = arith.constant 0 : index
    %c0_105 = arith.constant 0 : index
    %188 = vector.load %arg2[%c7, %c0_104, %c0_105] : memref<8x8x128xf32, #tpu.memory_space<vmem>>, vector<1x8x128xf32>
    %189 = vector.shape_cast %188 : vector<1x8x128xf32> to vector<8x128xf32>
    %cst_106 = arith.constant 0.951229453 : f32
    %190 = vector.broadcast %cst_106 : f32 to vector<8x128xf32>
    %191 = arith.mulf %190, %168 : vector<8x128xf32>
    %cst_107 = arith.constant 0.0487705767 : f32
    %192 = vector.broadcast %cst_107 : f32 to vector<8x128xf32>
    %193 = arith.mulf %192, %181 : vector<8x128xf32>
    %194 = arith.addf %191, %193 : vector<8x128xf32>
    %cst_108 = arith.constant 1.800000e+00 : f32
    %195 = vector.broadcast %cst_108 : f32 to vector<8x128xf32>
    %196 = arith.mulf %195, %194 : vector<8x128xf32>
    %cst_109 = arith.constant 1.000000e+00 : f32
    %197 = vector.broadcast %cst_109 : f32 to vector<8x128xf32>
    %198 = arith.addf %197, %196 : vector<8x128xf32>
    %cst_110 = arith.constant 0.949999988 : f32
    %199 = vector.broadcast %cst_110 : f32 to vector<8x128xf32>
    %200 = arith.mulf %199, %184 : vector<8x128xf32>
    %201 = arith.addf %200, %189 : vector<8x128xf32>
    %202 = arith.subf %201, %198 : vector<8x128xf32>
    %cst_111 = arith.constant 0.000000e+00 : f32
    %203 = vector.broadcast %cst_111 : f32 to vector<8x128xf32>
    %204 = arith.cmpf oge, %202, %203 : vector<8x128xf32>
    %cst_112 = arith.constant 1.000000e+00 : f32
    %cst_113 = arith.constant 0.000000e+00 : f32
    %205 = vector.broadcast %cst_112 : f32 to vector<8x128xf32>
    %206 = vector.broadcast %cst_113 : f32 to vector<8x128xf32>
    %207 = arith.select %204, %205, %206 : vector<8x128xi1>, vector<8x128xf32>
    %cst_114 = arith.constant 1.000000e+00 : f32
    %208 = vector.broadcast %cst_114 : f32 to vector<8x128xf32>
    %209 = arith.subf %208, %207 : vector<8x128xf32>
    %210 = arith.mulf %201, %209 : vector<8x128xf32>
    %c7_115 = arith.constant 7 : index
    %c0_116 = arith.constant 0 : index
    %c0_117 = arith.constant 0 : index
    %211 = vector.load %arg7[%c7_115, %c0_116, %c0_117] : memref<8x8x128xf32, #tpu.memory_space<vmem>>, vector<1x8x128xf32>
    %212 = vector.shape_cast %211 : vector<1x8x128xf32> to vector<8x128xf32>
    %213 = vector.shape_cast %207 : vector<8x128xf32> to vector<1x8x128xf32>
    tpu.vector_store %arg7[%c7_115, %c0_116, %c0_117], %213 {strides = array<i32>} : memref<8x8x128xf32, #tpu.memory_space<vmem>>, vector<1x8x128xf32>,
    %c0_118 = arith.constant 0 : index
    %c0_119 = arith.constant 0 : index
    %214 = vector.load %arg8[%c0_118, %c0_119] : memref<8x128xf32, #tpu.memory_space<vmem>>, vector<8x128xf32>
    tpu.vector_store %arg8[%c0_118, %c0_119], %189 {strides = array<i32>} : memref<8x128xf32, #tpu.memory_space<vmem>>, vector<8x128xf32>,
    %c0_120 = arith.constant 0 : index
    %c0_121 = arith.constant 0 : index
    %215 = vector.load %arg9[%c0_120, %c0_121] : memref<8x128xf32, #tpu.memory_space<vmem>>, vector<8x128xf32>
    tpu.vector_store %arg9[%c0_120, %c0_121], %210 {strides = array<i32>} : memref<8x128xf32, #tpu.memory_space<vmem>>, vector<8x128xf32>,
    %c0_122 = arith.constant 0 : index
    %c0_123 = arith.constant 0 : index
    %216 = vector.load %arg10[%c0_122, %c0_123] : memref<8x128xf32, #tpu.memory_space<vmem>>, vector<8x128xf32>
    tpu.vector_store %arg10[%c0_122, %c0_123], %207 {strides = array<i32>} : memref<8x128xf32, #tpu.memory_space<vmem>>, vector<8x128xf32>,
    %c0_124 = arith.constant 0 : index
    %c0_125 = arith.constant 0 : index
    %217 = vector.load %arg11[%c0_124, %c0_125] : memref<8x128xf32, #tpu.memory_space<vmem>>, vector<8x128xf32>
    tpu.vector_store %arg11[%c0_124, %c0_125], %194 {strides = array<i32>} : memref<8x128xf32, #tpu.memory_space<vmem>>, vector<8x128xf32>,
    return
  }
  func.func @transform_0(%arg0: i32, %arg1: i32) -> (i32, i32, i32) {
    %c0_i32 = arith.constant 0 : i32
    %c0_i32_0 = arith.constant 0 : i32
    return %arg1, %arg0, %c0_i32 : i32, i32, i32
  }
  func.func @transform_1(%arg0: i32, %arg1: i32) -> (i32, i32) {
    %c0_i32 = arith.constant 0 : i32
    %c0_i32_0 = arith.constant 0 : i32
    return %arg0, %c0_i32 : i32, i32
  }
  func.func @transform_2(%arg0: i32, %arg1: i32) -> (i32, i32) {
    %c0_i32 = arith.constant 0 : i32
    %c0_i32_0 = arith.constant 0 : i32
    return %arg0, %c0_i32 : i32, i32
  }
  func.func @transform_3(%arg0: i32, %arg1: i32) -> (i32, i32) {
    %c0_i32 = arith.constant 0 : i32
    %c0_i32_0 = arith.constant 0 : i32
    return %arg0, %c0_i32 : i32, i32
  }
  func.func @transform_4(%arg0: i32, %arg1: i32) -> (i32, i32) {
    %c0_i32 = arith.constant 0 : i32
    %c0_i32_0 = arith.constant 0 : i32
    return %arg0, %c0_i32 : i32, i32
  }
  func.func @transform_5(%arg0: i32, %arg1: i32) -> (i32, i32, i32) {
    %c0_i32 = arith.constant 0 : i32
    %c0_i32_0 = arith.constant 0 : i32
    return %arg1, %arg0, %c0_i32 : i32, i32, i32
  }
  func.func @transform_6(%arg0: i32, %arg1: i32) -> (i32, i32) {
    %c0_i32 = arith.constant 0 : i32
    %c0_i32_0 = arith.constant 0 : i32
    return %arg0, %c0_i32 : i32, i32
  }
  func.func @transform_7(%arg0: i32, %arg1: i32) -> (i32, i32) {
    %c0_i32 = arith.constant 0 : i32
    %c0_i32_0 = arith.constant 0 : i32
    return %arg0, %c0_i32 : i32, i32
  }
  func.func @transform_8(%arg0: i32, %arg1: i32) -> (i32, i32) {
    %c0_i32 = arith.constant 0 : i32
    %c0_i32_0 = arith.constant 0 : i32
    return %arg0, %c0_i32 : i32, i32
  }
  func.func @transform_9(%arg0: i32, %arg1: i32) -> (i32, i32) {
    %c0_i32 = arith.constant 0 : i32
    %c0_i32_0 = arith.constant 0 : i32
    return %arg0, %c0_i32 : i32, i32
  }
}

</mosaic_0001>

<llo_original>
// kernel: _alif_forward.1
$region0: #{_alif_forward.1}
  #allocation0 [shape = 'u32[]', space=smem, size = 0x4, offset = 0x4, fixed_abs, tag = 'smem constant byte address 0x4 - core index']
  #allocation1 [shape = 'u32[144,128]{1,0:T(1,128)}', space=vmem, size = 0x12000, scoped, tag = 'internal scratch']
  %s0 = inlined_call_operand.vmem [shape: f32[8,8,128], index: 0, kind: input, shape index: {}]
  %s1 = inlined_call_operand.vmem [shape: f32[8,128], index: 1, kind: input, shape index: {}, may-alias: {1,6}]
  %s2 = inlined_call_operand.vmem [shape: f32[8,128], index: 2, kind: input, shape index: {}, may-alias: {2,7}]
  %s3 = inlined_call_operand.vmem [shape: f32[8,128], index: 3, kind: input, shape index: {}, may-alias: {3,8}]
  %s4 = inlined_call_operand.vmem [shape: f32[8,128], index: 4, kind: input, shape index: {}, may-alias: {4,9}]
  %s5 = inlined_call_operand.vmem [shape: f32[8,8,128], index: 5, kind: output, shape index: {0}]
  %s6 = inlined_call_operand.vmem [shape: f32[8,128], index: 6, kind: output, shape index: {1}, may-alias: {1,6}]
  %s7 = inlined_call_operand.vmem [shape: f32[8,128], index: 7, kind: output, shape index: {2}, may-alias: {2,7}]
  %s8 = inlined_call_operand.vmem [shape: f32[8,128], index: 8, kind: output, shape index: {3}, may-alias: {3,8}]
  %s9 = inlined_call_operand.vmem [shape: f32[8,128], index: 9, kind: output, shape index: {4}, may-alias: {4,9}]
  %10 = xla_tuple %s5, %s6, %s7, %s8, %s9
  %s11 = sld [smem:[#allocation0]]
  $region66: #{_alif_forward.1} parent=0
    _
  %s13 = ssub.s32 1, %s11
  %s14 = scalar_select 0, %s13, %s11
  // Predicated region
  $region2: #{_alif_forward.1} parent=0 // pred_check
    _
  $region3: #{_alif_forward.1} parent=0 // pred_check_branch
    %16 = sbr.rel (0) target = $region5
  $region4: #{_alif_forward.1} parent=0 // pred_region
    _
  $region5: #{_alif_forward.1} parent=0 // pred_fallthru
    _
  // Predicated region
  $region6: #{_alif_forward.1} parent=0 // pred_check
    _
  $region7: #{_alif_forward.1} parent=0 // pred_check_branch
    %18 = sbr.rel (0) target = $region9
  $region8: #{_alif_forward.1} parent=0 // pred_region
    _
  $region9: #{_alif_forward.1} parent=0 // pred_fallthru
    _
  // Predicated region
  $region10: #{_alif_forward.1} parent=0 // pred_check
    _
  $region11: #{_alif_forward.1} parent=0 // pred_check_branch
    %20 = sbr.rel (0) target = $region13
  $region12: #{_alif_forward.1} parent=0 // pred_region
    _
  $region13: #{_alif_forward.1} parent=0 // pred_fallthru
    _
  // Predicated region
  $region14: #{_alif_forward.1} parent=0 // pred_check
    _
  $region15: #{_alif_forward.1} parent=0 // pred_check_branch
    %22 = sbr.rel (0) target = $region17
  $region16: #{_alif_forward.1} parent=0 // pred_region
    _
  $region17: #{_alif_forward.1} parent=0 // pred_fallthru
    _
  // Predicated region
  $region18: #{_alif_forward.1} parent=0 // pred_check
    _
  $region19: #{_alif_forward.1} parent=0 // pred_check_branch
    %24 = sbr.rel (0) target = $region21
  $region20: #{_alif_forward.1} parent=0 // pred_region
    _
  $region21: #{_alif_forward.1} parent=0 // pred_fallthru
    _
  %p25 = scmp.eq.s32.totalorder 0, 0
  // Predicated region
  $region22: #{_alif_forward.1} parent=0 // pred_check
    %p26 = pneg %p25
  $region23: #{_alif_forward.1} parent=0 // pred_check_branch
    %28 = sbr.rel (%p26) target = $region25
  $region24: #{_alif_forward.1} parent=0 // pred_region
    %v29 = vld [vmem:[%s1] sm:$0xff]
    %30 = vst [vmem:[%s6] sm:$0xff] %v29
    %v31 = vld [vmem:[%s2] sm:$0xff]
    %32 = vst [vmem:[%s7] sm:$0xff] %v31
    %v33 = vld [vmem:[%s3] sm:$0xff]
    %34 = vst [vmem:[%s8] sm:$0xff] %v33
    %v35 = vld [vmem:[%s4] sm:$0xff]
    %36 = vst [vmem:[%s9] sm:$0xff] %v35
  $region25: #{_alif_forward.1} parent=0 // pred_fallthru
    _
  %v37 = vld [vmem:[%s7] sm:$0xff]
  %v38 = vld [vmem:[%s8] sm:$0xff]
  %v39 = vld [vmem:[%s9] sm:$0xff]
  %v40 = vld [vmem:[%s0] sm:$0xff]
  %v41 = vmul.f32 %v39, 0.95122945
  %v42 = vmul.f32 %v38, 0.048770577
  %v43 = vadd.f32 %v41, %v42
  %v44 = vmul.f32 %v43, 1.8
  %v45 = vadd.f32 %v44, 1.0
  %v46 = vmul.f32 %v37, 0.95
  %v47 = vadd.f32 %v46, %v40
  %v48 = vsub.f32 %v47, %v45
  %vm49 = vcmp.ge.f32.partialorder %v48, 0.0
  %v50 = vsel %vm49, 1.0, 0.0
  %v51 = vsub.f32 1.0, %v50
  %v52 = vmul.f32 %v47, %v51
  %53 = vst [vmem:[%s5] sm:$0xff] %v50
  %s54 = scalar_lea.vmem %s0, 8
  %v55 = vld [vmem:[%s54] sm:$0xff]
  %v56 = vmul.f32 %v43, 0.95122945
  %v57 = vmul.f32 %v50, 0.048770577
  %v58 = vadd.f32 %v56, %v57
  %v59 = vmul.f32 %v58, 1.8
  %v60 = vadd.f32 %v59, 1.0
  %v61 = vmul.f32 %v52, 0.95
  %v62 = vadd.f32 %v61, %v55
  %v63 = vsub.f32 %v62, %v60
  %vm64 = vcmp.ge.f32.partialorder %v63, 0.0
  %v65 = vsel %vm64, 1.0, 0.0
  %v66 = vsub.f32 1.0, %v65
  %v67 = vmul.f32 %v62, %v66
  %s68 = scalar_lea.vmem %s5, 8
  %69 = vst [vmem:[%s68] sm:$0xff] %v65
  %s70 = scalar_lea.vmem %s0, 16
  %v71 = vld [vmem:[%s70] sm:$0xff]
  %v72 = vmul.f32 %v58, 0.95122945
  %v73 = vmul.f32 %v65, 0.048770577
  %v74 = vadd.f32 %v72, %v73
  %v75 = vmul.f32 %v74, 1.8
  %v76 = vadd.f32 %v75, 1.0
  %v77 = vmul.f32 %v67, 0.95
  %v78 = vadd.f32 %v77, %v71
  %v79 = vsub.f32 %v78, %v76
  %vm80 = vcmp.ge.f32.partialorder %v79, 0.0
  %v81 = vsel %vm80, 1.0, 0.0
  %v82 = vsub.f32 1.0, %v81
  %v83 = vmul.f32 %v78, %v82
  %s84 = scalar_lea.vmem %s5, 16
  %85 = vst [vmem:[%s84] sm:$0xff] %v81
  %s86 = scalar_lea.vmem %s0, 24
  %v87 = vld [vmem:[%s86] sm:$0xff]
  %v88 = vmul.f32 %v74, 0.95122945
  %v89 = vmul.f32 %v81, 0.048770577
  %v90 = vadd.f32 %v88, %v89
  %v91 = vmul.f32 %v90, 1.8
  %v92 = vadd.f32 %v91, 1.0
  %v93 = vmul.f32 %v83, 0.95
  %v94 = vadd.f32 %v93, %v87
  %v95 = vsub.f32 %v94, %v92
  %vm96 = vcmp.ge.f32.partialorder %v95, 0.0
  %v97 = vsel %vm96, 1.0, 0.0
  %v98 = vsub.f32 1.0, %v97
  %v99 = vmul.f32 %v94, %v98
  %s100 = scalar_lea.vmem %s5, 24
  %101 = vst [vmem:[%s100] sm:$0xff] %v97
  %s102 = scalar_lea.vmem %s0, 32
  %v103 = vld [vmem:[%s102] sm:$0xff]
  %v104 = vmul.f32 %v90, 0.95122945
  %v105 = vmul.f32 %v97, 0.048770577
  %v106 = vadd.f32 %v104, %v105
  %v107 = vmul.f32 %v106, 1.8
  %v108 = vadd.f32 %v107, 1.0
  %v109 = vmul.f32 %v99, 0.95
  %v110 = vadd.f32 %v109, %v103
  %v111 = vsub.f32 %v110, %v108
  %vm112 = vcmp.ge.f32.partialorder %v111, 0.0
  %v113 = vsel %vm112, 1.0, 0.0
  %v114 = vsub.f32 1.0, %v113
  %v115 = vmul.f32 %v110, %v114
  %s116 = scalar_lea.vmem %s5, 32
  %117 = vst [vmem:[%s116] sm:$0xff] %v113
  %s118 = scalar_lea.vmem %s0, 40
  %v119 = vld [vmem:[%s118] sm:$0xff]
  %v120 = vmul.f32 %v106, 0.95122945
  %v121 = vmul.f32 %v113, 0.048770577
  %v122 = vadd.f32 %v120, %v121
  %v123 = vmul.f32 %v122, 1.8
  %v124 = vadd.f32 %v123, 1.0
  %v125 = vmul.f32 %v115, 0.95
  %v126 = vadd.f32 %v125, %v119
  %v127 = vsub.f32 %v126, %v124
  %vm128 = vcmp.ge.f32.partialorder %v127, 0.0
  %v129 = vsel %vm128, 1.0, 0.0
  %v130 = vsub.f32 1.0, %v129
  %v131 = vmul.f32 %v126, %v130
  %s132 = scalar_lea.vmem %s5, 40
  %133 = vst [vmem:[%s132] sm:$0xff] %v129
  %s134 = scalar_lea.vmem %s0, 48
  %v135 = vld [vmem:[%s134] sm:$0xff]
  %v136 = vmul.f32 %v122, 0.95122945
  %v137 = vmul.f32 %v129, 0.048770577
  %v138 = vadd.f32 %v136, %v137
  %v139 = vmul.f32 %v138, 1.8
  %v140 = vadd.f32 %v139, 1.0
  %v141 = vmul.f32 %v131, 0.95
  %v142 = vadd.f32 %v141, %v135
  %v143 = vsub.f32 %v142, %v140
  %vm144 = vcmp.ge.f32.partialorder %v143, 0.0
  %v145 = vsel %vm144, 1.0, 0.0
  %v146 = vsub.f32 1.0, %v145
  %v147 = vmul.f32 %v142, %v146
  %s148 = scalar_lea.vmem %s5, 48
  %149 = vst [vmem:[%s148] sm:$0xff] %v145
  %s150 = scalar_lea.vmem %s0, 56
  %v151 = vld [vmem:[%s150] sm:$0xff]
  %v152 = vmul.f32 %v138, 0.95122945
  %v153 = vmul.f32 %v145, 0.048770577
  %v154 = vadd.f32 %v152, %v153
  %v155 = vmul.f32 %v154, 1.8
  %v156 = vadd.f32 %v155, 1.0
  %v157 = vmul.f32 %v147, 0.95
  %v158 = vadd.f32 %v157, %v151
  %v159 = vsub.f32 %v158, %v156
  %vm160 = vcmp.ge.f32.partialorder %v159, 0.0
  %v161 = vsel %vm160, 1.0, 0.0
  %v162 = vsub.f32 1.0, %v161
  %v163 = vmul.f32 %v158, %v162
  %s164 = scalar_lea.vmem %s5, 56
  %165 = vst [vmem:[%s164] sm:$0xff] %v161
  %166 = vst [vmem:[%s6] sm:$0xff] %v151
  %167 = vst [vmem:[%s7] sm:$0xff] %v163
  %168 = vst [vmem:[%s8] sm:$0xff] %v161
  %169 = vst [vmem:[%s9] sm:$0xff] %v154
  // Predicated region
  $region26: #{_alif_forward.1} parent=0 // pred_check
    _
  $region27: #{_alif_forward.1} parent=0 // pred_check_branch
    %171 = sbr.rel (0) target = $region29
  $region28: #{_alif_forward.1} parent=0 // pred_region
    _
  $region29: #{_alif_forward.1} parent=0 // pred_fallthru
    _
  // Predicated region
  $region30: #{_alif_forward.1} parent=0 // pred_check
    _
  $region31: #{_alif_forward.1} parent=0 // pred_check_branch
    %173 = sbr.rel (0) target = $region33
  $region32: #{_alif_forward.1} parent=0 // pred_region
    _
  $region33: #{_alif_forward.1} parent=0 // pred_fallthru
    _
  // Predicated region
  $region34: #{_alif_forward.1} parent=0 // pred_check
    _
  $region35: #{_alif_forward.1} parent=0 // pred_check_branch
    %175 = sbr.rel (0) target = $region37
  $region36: #{_alif_forward.1} parent=0 // pred_region
    _
  $region37: #{_alif_forward.1} parent=0 // pred_fallthru
    _
  // Predicated region
  $region38: #{_alif_forward.1} parent=0 // pred_check
    _
  $region39: #{_alif_forward.1} parent=0 // pred_check_branch
    %177 = sbr.rel (0) target = $region41
  $region40: #{_alif_forward.1} parent=0 // pred_region
    _
  $region41: #{_alif_forward.1} parent=0 // pred_fallthru
    _
  // Predicated region
  $region42: #{_alif_forward.1} parent=0 // pred_check
    _
  $region43: #{_alif_forward.1} parent=0 // pred_check_branch
    %179 = sbr.rel (0) target = $region45
  $region44: #{_alif_forward.1} parent=0 // pred_region
    _
  $region45: #{_alif_forward.1} parent=0 // pred_fallthru
    _
  // Predicated region
  $region46: #{_alif_forward.1} parent=0 // pred_check
    _
  $region47: #{_alif_forward.1} parent=0 // pred_check_branch
    %181 = sbr.rel (0) target = $region49
  $region48: #{_alif_forward.1} parent=0 // pred_region
    _
  $region49: #{_alif_forward.1} parent=0 // pred_fallthru
    _
  // Predicated region
  $region50: #{_alif_forward.1} parent=0 // pred_check
    _
  $region51: #{_alif_forward.1} parent=0 // pred_check_branch
    %183 = sbr.rel (0) target = $region53
  $region52: #{_alif_forward.1} parent=0 // pred_region
    _
  $region53: #{_alif_forward.1} parent=0 // pred_fallthru
    _
  // Predicated region
  $region54: #{_alif_forward.1} parent=0 // pred_check
    _
  $region55: #{_alif_forward.1} parent=0 // pred_check_branch
    %185 = sbr.rel (0) target = $region57
  $region56: #{_alif_forward.1} parent=0 // pred_region
    _
  $region57: #{_alif_forward.1} parent=0 // pred_fallthru
    _
  // Predicated region
  $region58: #{_alif_forward.1} parent=0 // pred_check
    _
  $region59: #{_alif_forward.1} parent=0 // pred_check_branch
    %187 = sbr.rel (0) target = $region61
  $region60: #{_alif_forward.1} parent=0 // pred_region
    _
  $region61: #{_alif_forward.1} parent=0 // pred_fallthru
    _
  // Predicated region
  $region62: #{_alif_forward.1} parent=0 // pred_check
    _
  $region63: #{_alif_forward.1} parent=0 // pred_check_branch
    %189 = sbr.rel (0) target = $region65
  $region64: #{_alif_forward.1} parent=0 // pred_region
    _
  $region65: #{_alif_forward.1} parent=0 // pred_fallthru
    _

</llo_original>
